<compile_context>
chip_gen: v7x
topology: tpu7x:2x2x1
jax: 0.10.0
libtpu: 0.0.40
codegen_flags: <defaults>
</compile_context>

<pallas_src>
import jax
import jax.numpy as jnp
from jax.experimental import pallas as pl
from jax.experimental.pallas import tpu as pltpu

IN_DIM = 28 * 28          # 784  (torch .view(-1, 784))
HID1 = 256
HID2 = 128
OUT_DIM = 10
OUT_PAD = 128             # lane-dense output; real logits live in cols 0..9
MAX_TILE_B = 512          # upper bound on the batch (M) tile


def _round_up(x, m):
    return ((x + m - 1) // m) * m


def _cdiv(a, b):
    return (a + b - 1) // b


def _choose_tile(B):
    """Pick the batch tile: as large as MAX_TILE_B, multiple of 8 (sublane);
    for large B, round the step count up to an even number (v7x: 2 TCs)."""
    if B <= MAX_TILE_B:
        return max(8, _round_up(B, 8))            # single grid step
    n_steps = _cdiv(B, MAX_TILE_B)
    if n_steps % 2:
        n_steps += 1                              # even steps for the 2 v7x TCs
    return _round_up(_cdiv(B, n_steps), 8)


def _resident_spec(shape):
    # Constant block index every grid step -> single-buffer the VMEM-resident
    # weights / biases (no point double-buffering them).
    return pl.BlockSpec(shape, lambda i: (0,) * len(shape),
                        pipeline_mode=pl.Buffered(1))


def _mlp_kernel(x_ref, w1_ref, b1_ref, w2_ref, b2_ref, w3_ref, b3_ref, o_ref):
    # Fused 3-layer MLP on one batch tile. bf16 operands feed the MXU fast
    # path; accumulation is f32, biases added in f32 once per tile.
    x = x_ref[...].astype(jnp.bfloat16)                                # [tb, 784]
    h1 = jnp.dot(x, w1_ref[...], preferred_element_type=jnp.float32) + b1_ref[...]
    h1 = jnp.maximum(h1, 0.0)
    # (dropout == identity at inference)
    h2 = jnp.dot(h1.astype(jnp.bfloat16), w2_ref[...],
                 preferred_element_type=jnp.float32) + b2_ref[...]
    h2 = jnp.maximum(h2, 0.0)
    # (dropout == identity at inference)
    logits = jnp.dot(h2.astype(jnp.bfloat16), w3_ref[...],
                     preferred_element_type=jnp.float32) + b3_ref[...]
    o_ref[...] = logits.astype(o_ref.dtype)                            # bf16 store


@jax.jit
def net_forward(x, w1, b1, w2, b2, w3, b3):
    """x: [..., 28, 28] (e.g. NCHW [B,1,28,28]) or [B, 784]. Returns f32 logits [B, 10]."""
    x2d = x.reshape(-1, IN_DIM)                   # same as torch .view(-1, 784)
    B = x2d.shape[0]                              # static under jit
    tile_b = _choose_tile(B)
    n_tiles = _cdiv(B, tile_b)

    # One-time, tiny weight/bias prep: weights -> bf16, fc3 lane-padded to 128
    # output columns; biases stay f32 (added to the f32 accumulators).
    w1_b = w1.astype(jnp.bfloat16)
    w2_b = w2.astype(jnp.bfloat16)
    w3_p = jnp.zeros((HID2, OUT_PAD), jnp.bfloat16).at[:, :OUT_DIM].set(
        w3.astype(jnp.bfloat16))
    b1r = b1.reshape(1, HID1).astype(jnp.float32)
    b2r = b2.reshape(1, HID2).astype(jnp.float32)
    b3r = jnp.zeros((1, OUT_PAD), jnp.float32).at[0, :OUT_DIM].set(
        b3.astype(jnp.float32))

    flops = 2 * B * (IN_DIM * HID1 + HID1 * HID2 + HID2 * OUT_PAD)
    bytes_accessed = (
        B * IN_DIM * 4                                         # x (f32, read once)
        + (IN_DIM * HID1 + HID1 * HID2 + HID2 * OUT_PAD) * 2   # bf16 weights
        + (HID1 + HID2 + OUT_PAD) * 4                          # f32 biases
        + B * OUT_PAD * 2)                                     # bf16 logits
    cost = pl.CostEstimate(flops=flops, transcendentals=0,
                           bytes_accessed=bytes_accessed)

    logits_p = pl.pallas_call(
        _mlp_kernel,
        out_shape=jax.ShapeDtypeStruct((B, OUT_PAD), jnp.bfloat16),
        grid_spec=pltpu.PrefetchScalarGridSpec(
            num_scalar_prefetch=0,
            grid=(n_tiles,),
            in_specs=[
                # batch-tiled activations, streamed straight from HBM as f32
                pl.BlockSpec((tile_b, IN_DIM), lambda i: (i, 0)),
                # weights / biases: full arrays, VMEM-resident, single-buffered
                _resident_spec((IN_DIM, HID1)),
                _resident_spec((1, HID1)),
                _resident_spec((HID1, HID2)),
                _resident_spec((1, HID2)),
                _resident_spec((HID2, OUT_PAD)),
                _resident_spec((1, OUT_PAD)),
            ],
            out_specs=pl.BlockSpec((tile_b, OUT_PAD), lambda i: (i, 0)),
        ),
        compiler_params=pltpu.CompilerParams(
            # Only buys anything on v7x (2 TCs); harmless no-op on v5e/v6e.
            dimension_semantics=("parallel",),
        ),
        cost_estimate=cost,
    )(x2d, w1_b, b1r, w2_b, b2r, w3_p, b3r)

    # Drop the 118 zero lanes of the lane-dense logits; return f32 like torch.
    return logits_p[:, :OUT_DIM].astype(jnp.float32)


def init_params(key):
    """Deterministic parameter init (PyTorch Linear shapes, stored as [in, out])."""
    k1, k2, k3, k4, k5, k6 = jax.random.split(key, 6)

    def lin(kw, kb, fan_in, fan_out):
        bound = 1.0 / jnp.sqrt(fan_in)
        w = jax.random.uniform(kw, (fan_in, fan_out), jnp.float32, -bound, bound)
        b = jax.random.uniform(kb, (fan_out,), jnp.float32, -bound, bound)
        return w, b

    w1, b1 = lin(k1, k2, IN_DIM, HID1)
    w2, b2 = lin(k3, k4, HID1, HID2)
    w3, b3 = lin(k5, k6, HID2, OUT_DIM)
    return w1, b1, w2, b2, w3, b3


def _reference(x, w1, b1, w2, b2, w3, b3):
    # Plain-JAX f32 reference (inference semantics: dropout == identity).
    xr = x.reshape(-1, IN_DIM)
    h = jnp.maximum(xr @ w1 + b1, 0.0)
    h = jnp.maximum(h @ w2 + b2, 0.0)
    return h @ w3 + b3


if __name__ == "__main__":
    key = jax.random.PRNGKey(0)
    kx, kx2, kp = jax.random.split(key, 3)

    params = init_params(kp)

    # MNIST-like batch [B, 1, 28, 28].
    B = 64
    x = jax.random.normal(kx, (B, 1, 28, 28), jnp.float32)
    out = jax.block_until_ready(net_forward(x, *params))
    ref = _reference(x, *params)
    assert out.shape == (B, OUT_DIM)
    # bf16 operands / bf16 logits store with f32 accumulation -> loose tol.
    assert jnp.allclose(out, ref, atol=3e-2, rtol=3e-2), float(
        jnp.max(jnp.abs(out - ref)))

    # Ragged batch: exercises the partial trailing block (padded reads of the
    # overhang rows, masked output stores) without any wrapper padding copy.
    B2 = 50
    x2 = jax.random.normal(kx2, (B2, 1, 28, 28), jnp.float32)
    out2 = jax.block_until_ready(net_forward(x2, *params))
    ref2 = _reference(x2, *params)
    assert out2.shape == (B2, OUT_DIM)
    assert jnp.allclose(out2, ref2, atol=3e-2, rtol=3e-2), float(
        jnp.max(jnp.abs(out2 - ref2)))

    print("KERNEL_OK")
</pallas_src>

<mosaic_0001>
module attributes {stable_mosaic.version = 11 : i64} {
  func.func @_mlp_kernel(%arg0: i32, %arg1: memref<64x784xf32, #tpu.memory_space<vmem>>, %arg2: memref<784x256xbf16, #tpu.memory_space<vmem>>, %arg3: memref<1x256xf32, #tpu.memory_space<vmem>>, %arg4: memref<256x128xbf16, #tpu.memory_space<vmem>>, %arg5: memref<1x128xf32, #tpu.memory_space<vmem>>, %arg6: memref<128x128xbf16, #tpu.memory_space<vmem>>, %arg7: memref<1x128xf32, #tpu.memory_space<vmem>>, %arg8: memref<64x128xbf16, #tpu.memory_space<vmem>>) attributes {dimension_semantics = [#tpu.dimension_semantics<parallel>], iteration_bounds = array<i64: 1>, scalar_prefetch = 0 : i64, scratch_operands = 0 : i64, tpu.core_type = #tpu.core_type<tc>, window_params = [{transform_indices = @transform_0, window_bounds = array<i64: 64, 784>}, {pipeline_mode = #tpu.pipeline_mode<synchronous>, transform_indices = @transform_1, window_bounds = array<i64: 784, 256>}, {pipeline_mode = #tpu.pipeline_mode<synchronous>, transform_indices = @transform_2, window_bounds = array<i64: 1, 256>}, {pipeline_mode = #tpu.pipeline_mode<synchronous>, transform_indices = @transform_3, window_bounds = array<i64: 256, 128>}, {pipeline_mode = #tpu.pipeline_mode<synchronous>, transform_indices = @transform_4, window_bounds = array<i64: 1, 128>}, {pipeline_mode = #tpu.pipeline_mode<synchronous>, transform_indices = @transform_5, window_bounds = array<i64: 128, 128>}, {pipeline_mode = #tpu.pipeline_mode<synchronous>, transform_indices = @transform_6, window_bounds = array<i64: 1, 128>}, {transform_indices = @transform_7, window_bounds = array<i64: 64, 128>}]} {
    %c0 = arith.constant 0 : index
    %c0_0 = arith.constant 0 : index
    %0 = vector.load %arg1[%c0, %c0_0] : memref<64x784xf32, #tpu.memory_space<vmem>>, vector<64x784xf32>
    %1 = arith.truncf %0 : vector<64x784xf32> to vector<64x784xbf16>
    %c0_1 = arith.constant 0 : index
    %c0_2 = arith.constant 0 : index
    %2 = vector.load %arg2[%c0_1, %c0_2] : memref<784x256xbf16, #tpu.memory_space<vmem>>, vector<784x256xbf16>
    %cst = arith.constant dense<0.000000e+00> : vector<64x256xf32>
    %3 = tpu.matmul %1, %2, %cst {dimension_numbers = #tpu.dot_dimension_numbers<[1], [0], [0], [1], [0, 0, 1, 1], [], []>} : vector<64x784xbf16>, vector<784x256xbf16>, vector<64x256xf32> -> vector<64x256xf32>
    %c0_3 = arith.constant 0 : index
    %c0_4 = arith.constant 0 : index
    %4 = vector.load %arg3[%c0_3, %c0_4] : memref<1x256xf32, #tpu.memory_space<vmem>>, vector<1x256xf32>
    %5 = vector.broadcast %4 : vector<1x256xf32> to vector<64x256xf32>
    %6 = arith.addf %3, %5 : vector<64x256xf32>
    %cst_5 = arith.constant 0.000000e+00 : f32
    %7 = vector.broadcast %cst_5 : f32 to vector<64x256xf32>
    %8 = arith.maximumf %6, %7 : vector<64x256xf32>
    %9 = arith.truncf %8 : vector<64x256xf32> to vector<64x256xbf16>
    %c0_6 = arith.constant 0 : index
    %c0_7 = arith.constant 0 : index
    %10 = vector.load %arg4[%c0_6, %c0_7] : memref<256x128xbf16, #tpu.memory_space<vmem>>, vector<256x128xbf16>
    %cst_8 = arith.constant dense<0.000000e+00> : vector<64x128xf32>
    %11 = tpu.matmul %9, %10, %cst_8 {dimension_numbers = #tpu.dot_dimension_numbers<[1], [0], [0], [1], [0, 0, 1, 1], [], []>} : vector<64x256xbf16>, vector<256x128xbf16>, vector<64x128xf32> -> vector<64x128xf32>
    %c0_9 = arith.constant 0 : index
    %c0_10 = arith.constant 0 : index
    %12 = vector.load %arg5[%c0_9, %c0_10] : memref<1x128xf32, #tpu.memory_space<vmem>>, vector<1x128xf32>
    %13 = vector.broadcast %12 : vector<1x128xf32> to vector<64x128xf32>
    %14 = arith.addf %11, %13 : vector<64x128xf32>
    %cst_11 = arith.constant 0.000000e+00 : f32
    %15 = vector.broadcast %cst_11 : f32 to vector<64x128xf32>
    %16 = arith.maximumf %14, %15 : vector<64x128xf32>
    %17 = arith.truncf %16 : vector<64x128xf32> to vector<64x128xbf16>
    %c0_12 = arith.constant 0 : index
    %c0_13 = arith.constant 0 : index
    %18 = vector.load %arg6[%c0_12, %c0_13] : memref<128x128xbf16, #tpu.memory_space<vmem>>, vector<128x128xbf16>
    %cst_14 = arith.constant dense<0.000000e+00> : vector<64x128xf32>
    %19 = tpu.matmul %17, %18, %cst_14 {dimension_numbers = #tpu.dot_dimension_numbers<[1], [0], [0], [1], [0, 0, 1, 1], [], []>} : vector<64x128xbf16>, vector<128x128xbf16>, vector<64x128xf32> -> vector<64x128xf32>
    %c0_15 = arith.constant 0 : index
    %c0_16 = arith.constant 0 : index
    %20 = vector.load %arg7[%c0_15, %c0_16] : memref<1x128xf32, #tpu.memory_space<vmem>>, vector<1x128xf32>
    %21 = vector.broadcast %20 : vector<1x128xf32> to vector<64x128xf32>
    %22 = arith.addf %19, %21 : vector<64x128xf32>
    %23 = arith.truncf %22 : vector<64x128xf32> to vector<64x128xbf16>
    %c0_17 = arith.constant 0 : index
    %c0_18 = arith.constant 0 : index
    %24 = vector.load %arg8[%c0_17, %c0_18] : memref<64x128xbf16, #tpu.memory_space<vmem>>, vector<64x128xbf16>
    tpu.vector_store %arg8[%c0_17, %c0_18], %23 {strides = array<i32>} : memref<64x128xbf16, #tpu.memory_space<vmem>>, vector<64x128xbf16>,
    return
  }
  func.func @transform_0(%arg0: i32) -> (i32, i32) {
    %c0_i32 = arith.constant 0 : i32
    %c0_i32_0 = arith.constant 0 : i32
    return %arg0, %c0_i32 : i32, i32
  }
  func.func @transform_1(%arg0: i32) -> (i32, i32) {
    %c0_i32 = arith.constant 0 : i32
    %c0_i32_0 = arith.constant 0 : i32
    %c0_i32_1 = arith.constant 0 : i32
    return %c0_i32, %c0_i32_0 : i32, i32
  }
  func.func @transform_2(%arg0: i32) -> (i32, i32) {
    %c0_i32 = arith.constant 0 : i32
    %c0_i32_0 = arith.constant 0 : i32
    %c0_i32_1 = arith.constant 0 : i32
    return %c0_i32, %c0_i32_0 : i32, i32
  }
  func.func @transform_3(%arg0: i32) -> (i32, i32) {
    %c0_i32 = arith.constant 0 : i32
    %c0_i32_0 = arith.constant 0 : i32
    %c0_i32_1 = arith.constant 0 : i32
    return %c0_i32, %c0_i32_0 : i32, i32
  }
  func.func @transform_4(%arg0: i32) -> (i32, i32) {
    %c0_i32 = arith.constant 0 : i32
    %c0_i32_0 = arith.constant 0 : i32
    %c0_i32_1 = arith.constant 0 : i32
    return %c0_i32, %c0_i32_0 : i32, i32
  }
  func.func @transform_5(%arg0: i32) -> (i32, i32) {
    %c0_i32 = arith.constant 0 : i32
    %c0_i32_0 = arith.constant 0 : i32
    %c0_i32_1 = arith.constant 0 : i32
    return %c0_i32, %c0_i32_0 : i32, i32
  }
  func.func @transform_6(%arg0: i32) -> (i32, i32) {
    %c0_i32 = arith.constant 0 : i32
    %c0_i32_0 = arith.constant 0 : i32
    %c0_i32_1 = arith.constant 0 : i32
    return %c0_i32, %c0_i32_0 : i32, i32
  }
  func.func @transform_7(%arg0: i32) -> (i32, i32) {
    %c0_i32 = arith.constant 0 : i32
    %c0_i32_0 = arith.constant 0 : i32
    return %arg0, %c0_i32 : i32, i32
  }
}

</mosaic_0001>

<llo_original>
// kernel: net_forward.1
$region0: #{net_forward.1}
  #allocation0 [shape = 'u32[]', space=smem, size = 0x4, offset = 0x4, fixed_abs, tag = 'smem constant byte address 0x4 - core index']
  #allocation1 [shape = 'u32[144,128]{1,0:T(1,128)}', space=vmem, size = 0x12000, scoped, tag = 'internal scratch']
  %s0 = inlined_call_operand.vmem [shape: f32[64,784], index: 0, kind: input, shape index: {}]
  %s1 = inlined_call_operand.vmem [shape: bf16[784,256], index: 1, kind: input, shape index: {}]
  %s2 = inlined_call_operand.vmem [shape: f32[1,256], index: 2, kind: input, shape index: {}]
  %s3 = inlined_call_operand.vmem [shape: bf16[256,128], index: 3, kind: input, shape index: {}]
  %s4 = inlined_call_operand.vmem [shape: f32[1,128], index: 4, kind: input, shape index: {}]
  %s5 = inlined_call_operand.vmem [shape: bf16[128,128], index: 5, kind: input, shape index: {}]
  %s6 = inlined_call_operand.vmem [shape: f32[1,128], index: 6, kind: input, shape index: {}]
  %s7 = inlined_call_operand.vmem [shape: bf16[64,128], index: 7, kind: output, shape index: {}]
  %s8 = sld [smem:[#allocation0]]
  $region38: #{net_forward.1} parent=0
    _
  %s10 = ssub.s32 1, %s8
  %s11 = scalar_select 0, %s10, %s8
  // Predicated region
  $region2: #{net_forward.1} parent=0 // pred_check
    _
  $region3: #{net_forward.1} parent=0 // pred_check_branch
    %13 = sbr.rel (0) target = $region5
  $region4: #{net_forward.1} parent=0 // pred_region
    _
  $region5: #{net_forward.1} parent=0 // pred_fallthru
    _
  // Predicated region
  $region6: #{net_forward.1} parent=0 // pred_check
    _
  $region7: #{net_forward.1} parent=0 // pred_check_branch
    %15 = sbr.rel (0) target = $region9
  $region8: #{net_forward.1} parent=0 // pred_region
    _
  $region9: #{net_forward.1} parent=0 // pred_fallthru
    _
  // Predicated region
  $region10: #{net_forward.1} parent=0 // pred_check
    _
  $region11: #{net_forward.1} parent=0 // pred_check_branch
    %17 = sbr.rel (0) target = $region13
  $region12: #{net_forward.1} parent=0 // pred_region
    _
  $region13: #{net_forward.1} parent=0 // pred_fallthru
    _
  // Predicated region
  $region14: #{net_forward.1} parent=0 // pred_check
    _
  $region15: #{net_forward.1} parent=0 // pred_check_branch
    %19 = sbr.rel (0) target = $region17
  $region16: #{net_forward.1} parent=0 // pred_region
    _
  $region17: #{net_forward.1} parent=0 // pred_fallthru
    _
  // Predicated region
  $region18: #{net_forward.1} parent=0 // pred_check
    _
  $region19: #{net_forward.1} parent=0 // pred_check_branch
    %21 = sbr.rel (0) target = $region21
  $region20: #{net_forward.1} parent=0 // pred_region
    _
  $region21: #{net_forward.1} parent=0 // pred_fallthru
    _
  // Predicated region
  $region22: #{net_forward.1} parent=0 // pred_check
    _
  $region23: #{net_forward.1} parent=0 // pred_check_branch
    %23 = sbr.rel (0) target = $region25
  $region24: #{net_forward.1} parent=0 // pred_region
    _
  $region25: #{net_forward.1} parent=0 // pred_fallthru
    _
  // Predicated region
  $region26: #{net_forward.1} parent=0 // pred_check
    _
  $region27: #{net_forward.1} parent=0 // pred_check_branch
    %25 = sbr.rel (0) target = $region29
  $region28: #{net_forward.1} parent=0 // pred_region
    _
  $region29: #{net_forward.1} parent=0 // pred_fallthru
    _
  %v27 = vld [vmem:[%s0] sm:$0xff]
  %v28 = vld [vmem:[%s0 + $0x8] sm:$0xff]
  %v29 = vld [vmem:[%s0 + $0x10] sm:$0xff]
  %v30 = vld [vmem:[%s0 + $0x18] sm:$0xff]
  %v31 = vld [vmem:[%s0 + $0x20] sm:$0xff]
  %v32 = vld [vmem:[%s0 + $0x28] sm:$0xff]
  %v33 = vld [vmem:[%s0 + $0x30] sm:$0xff]
  %v34 = vld [vmem:[%s0 + $0x38] sm:$0xff]
  %v35 = vld [vmem:[%s0 + $0x40] sm:$0xff]
  %v36 = vld [vmem:[%s0 + $0x48] sm:$0xff]
  %v37 = vld [vmem:[%s0 + $0x50] sm:$0xff]
  %v38 = vld [vmem:[%s0 + $0x58] sm:$0xff]
  %v39 = vld [vmem:[%s0 + $0x60] sm:$0xff]
  %v40 = vld [vmem:[%s0 + $0x68] sm:$0xff]
  %v41 = vld [vmem:[%s0 + $0x70] sm:$0xff]
  %v42 = vld [vmem:[%s0 + $0x78] sm:$0xff]
  %v43 = vld [vmem:[%s0 + $0x80] sm:$0xff]
  %v44 = vld [vmem:[%s0 + $0x88] sm:$0xff]
  %v45 = vld [vmem:[%s0 + $0x90] sm:$0xff]
  %v46 = vld [vmem:[%s0 + $0x98] sm:$0xff]
  %v47 = vld [vmem:[%s0 + $0xa0] sm:$0xff]
  %v48 = vld [vmem:[%s0 + $0xa8] sm:$0xff]
  %v49 = vld [vmem:[%s0 + $0xb0] sm:$0xff]
  %v50 = vld [vmem:[%s0 + $0xb8] sm:$0xff]
  %v51 = vld [vmem:[%s0 + $0xc0] sm:$0xff]
  %v52 = vld [vmem:[%s0 + $0xc8] sm:$0xff]
  %v53 = vld [vmem:[%s0 + $0xd0] sm:$0xff]
  %v54 = vld [vmem:[%s0 + $0xd8] sm:$0xff]
  %v55 = vld [vmem:[%s0 + $0xe0] sm:$0xff]
  %v56 = vld [vmem:[%s0 + $0xe8] sm:$0xff]
  %v57 = vld [vmem:[%s0 + $0xf0] sm:$0xff]
  %v58 = vld [vmem:[%s0 + $0xf8] sm:$0xff]
  %v59 = vld [vmem:[%s0 + $0x100] sm:$0xff]
  %v60 = vld [vmem:[%s0 + $0x108] sm:$0xff]
  %v61 = vld [vmem:[%s0 + $0x110] sm:$0xff]
  %v62 = vld [vmem:[%s0 + $0x118] sm:$0xff]
  %v63 = vld [vmem:[%s0 + $0x120] sm:$0xff]
  %v64 = vld [vmem:[%s0 + $0x128] sm:$0xff]
  %v65 = vld [vmem:[%s0 + $0x130] sm:$0xff]
  %v66 = vld [vmem:[%s0 + $0x138] sm:$0xff]
  %v67 = vld [vmem:[%s0 + $0x140] sm:$0xff]
  %v68 = vld [vmem:[%s0 + $0x148] sm:$0xff]
  %v69 = vld [vmem:[%s0 + $0x150] sm:$0xff]
  %v70 = vld [vmem:[%s0 + $0x158] sm:$0xff]
  %v71 = vld [vmem:[%s0 + $0x160] sm:$0xff]
  %v72 = vld [vmem:[%s0 + $0x168] sm:$0xff]
  %v73 = vld [vmem:[%s0 + $0x170] sm:$0xff]
  %v74 = vld [vmem:[%s0 + $0x178] sm:$0xff]
  %v75 = vld [vmem:[%s0 + $0x180] sm:$0xff]
  %v76 = vld [vmem:[%s0 + $0x188] sm:$0xff]
  %v77 = vld [vmem:[%s0 + $0x190] sm:$0xff]
  %v78 = vld [vmem:[%s0 + $0x198] sm:$0xff]
  %v79 = vld [vmem:[%s0 + $0x1a0] sm:$0xff]
  %v80 = vld [vmem:[%s0 + $0x1a8] sm:$0xff]
  %v81 = vld [vmem:[%s0 + $0x1b0] sm:$0xff]
  %v82 = vld [vmem:[%s0 + $0x1b8] sm:$0xff]
  %v83 = vpack.c.bf16 %v34, %v27
  %v84 = vpack.c.bf16 %v35, %v28
  %v85 = vpack.c.bf16 %v36, %v29
  %v86 = vpack.c.bf16 %v37, %v30
  %v87 = vpack.c.bf16 %v38, %v31
  %v88 = vpack.c.bf16 %v39, %v32
  %v89 = vpack.c.bf16 %v40, %v33
  %v90 = vpack.c.bf16 %v48, %v41
  %v91 = vpack.c.bf16 %v49, %v42
  %v92 = vpack.c.bf16 %v50, %v43
  %v93 = vpack.c.bf16 %v51, %v44
  %v94 = vpack.c.bf16 %v52, %v45
  %v95 = vpack.c.bf16 %v53, %v46
  %v96 = vpack.c.bf16 %v54, %v47
  %v97 = vpack.c.bf16 %v62, %v55
  %v98 = vpack.c.bf16 %v63, %v56
  %v99 = vpack.c.bf16 %v64, %v57
  %v100 = vpack.c.bf16 %v65, %v58
  %v101 = vpack.c.bf16 %v66, %v59
  %v102 = vpack.c.bf16 %v67, %v60
  %v103 = vpack.c.bf16 %v68, %v61
  %v104 = vpack.c.bf16 %v76, %v69
  %v105 = vpack.c.bf16 %v77, %v70
  %v106 = vpack.c.bf16 %v78, %v71
  %v107 = vpack.c.bf16 %v79, %v72
  %v108 = vpack.c.bf16 %v80, %v73
  %v109 = vpack.c.bf16 %v81, %v74
  %v110 = vpack.c.bf16 %v82, %v75
  %v111 = vld [vmem:[%s1] sm:$0xff]
  %v112 = vld [vmem:[%s1 + $0x8] sm:$0xff]
  %v113 = vld [vmem:[%s1 + $0x10] sm:$0xff]
  %v114 = vld [vmem:[%s1 + $0x18] sm:$0xff]
  %v115 = vld [vmem:[%s1 + $0x20] sm:$0xff]
  %v116 = vld [vmem:[%s1 + $0x28] sm:$0xff]
  %v117 = vld [vmem:[%s1 + $0x30] sm:$0xff]
  %v118 = vld [vmem:[%s1 + $0x38] sm:$0xff]
  %v119 = vld [vmem:[%s1 + $0x40] sm:$0xff]
  %v120 = vld [vmem:[%s1 + $0x48] sm:$0xff]
  %v121 = vld [vmem:[%s1 + $0x50] sm:$0xff]
  %v122 = vld [vmem:[%s1 + $0x58] sm:$0xff]
  %v123 = vld [vmem:[%s1 + $0x60] sm:$0xff]
  %v124 = vld [vmem:[%s1 + $0x68] sm:$0xff]
  %v125 = vld [vmem:[%s1 + $0x70] sm:$0xff]
  %v126 = vld [vmem:[%s1 + $0x78] sm:$0xff]
  %v127 = vld [vmem:[%s1 + $0x80] sm:$0xff]
  %v128 = vld [vmem:[%s1 + $0x88] sm:$0xff]
  %v129 = vld [vmem:[%s1 + $0x90] sm:$0xff]
  %v130 = vld [vmem:[%s1 + $0x98] sm:$0xff]
  %v131 = vld [vmem:[%s1 + $0xa0] sm:$0xff]
  %v132 = vld [vmem:[%s1 + $0xa8] sm:$0xff]
  %v133 = vld [vmem:[%s1 + $0xb0] sm:$0xff]
  %v134 = vld [vmem:[%s1 + $0xb8] sm:$0xff]
  %v135 = vld [vmem:[%s1 + $0xc0] sm:$0xff]
  %v136 = vld [vmem:[%s1 + $0xc8] sm:$0xff]
  %v137 = vld [vmem:[%s1 + $0xd0] sm:$0xff]
  %v138 = vld [vmem:[%s1 + $0xd8] sm:$0xff]
  %v139 = vld [vmem:[%s1 + $0xe0] sm:$0xff]
  %v140 = vld [vmem:[%s1 + $0xe8] sm:$0xff]
  %v141 = vld [vmem:[%s1 + $0xf0] sm:$0xff]
  %v142 = vld [vmem:[%s1 + $0xf8] sm:$0xff]
  %v143 = vld [vmem:[%s1 + $0x100] sm:$0xff]
  %v144 = vld [vmem:[%s1 + $0x108] sm:$0xff]
  %v145 = vld [vmem:[%s1 + $0x110] sm:$0xff]
  %v146 = vld [vmem:[%s1 + $0x118] sm:$0xff]
  %v147 = vld [vmem:[%s1 + $0x120] sm:$0xff]
  %v148 = vld [vmem:[%s1 + $0x128] sm:$0xff]
  %v149 = vld [vmem:[%s1 + $0x130] sm:$0xff]
  %v150 = vld [vmem:[%s1 + $0x138] sm:$0xff]
  %v151 = vld [vmem:[%s1 + $0x140] sm:$0xff]
  %v152 = vld [vmem:[%s1 + $0x148] sm:$0xff]
  %v153 = vld [vmem:[%s1 + $0x150] sm:$0xff]
  %v154 = vld [vmem:[%s1 + $0x158] sm:$0xff]
  %v155 = vld [vmem:[%s1 + $0x160] sm:$0xff]
  %v156 = vld [vmem:[%s1 + $0x168] sm:$0xff]
  %v157 = vld [vmem:[%s1 + $0x170] sm:$0xff]
  %v158 = vld [vmem:[%s1 + $0x178] sm:$0xff]
  %v159 = vld [vmem:[%s1 + $0x180] sm:$0xff]
  %v160 = vld [vmem:[%s1 + $0x188] sm:$0xff]
  %v161 = vld [vmem:[%s1 + $0x190] sm:$0xff]
  %v162 = vld [vmem:[%s1 + $0x198] sm:$0xff]
  %v163 = vld [vmem:[%s1 + $0x1a0] sm:$0xff]
  %v164 = vld [vmem:[%s1 + $0x1a8] sm:$0xff]
  %v165 = vld [vmem:[%s1 + $0x1b0] sm:$0xff]
  %v166 = vld [vmem:[%s1 + $0x1b8] sm:$0xff]
  %v167 = vld [vmem:[%s1 + $0x1c0] sm:$0xff]
  %v168 = vld [vmem:[%s1 + $0x1c8] sm:$0xff]
  %v169 = vld [vmem:[%s1 + $0x1d0] sm:$0xff]
  %v170 = vld [vmem:[%s1 + $0x1d8] sm:$0xff]
  %v171 = vld [vmem:[%s1 + $0x1e0] sm:$0xff]
  %v172 = vld [vmem:[%s1 + $0x1e8] sm:$0xff]
  %v173 = vld [vmem:[%s1 + $0x1f0] sm:$0xff]
  %v174 = vld [vmem:[%s1 + $0x1f8] sm:$0xff]
  %v175 = vld [vmem:[%s1 + $0x200] sm:$0xff]
  %v176 = vld [vmem:[%s1 + $0x208] sm:$0xff]
  %v177 = vld [vmem:[%s1 + $0x210] sm:$0xff]
  %v178 = vld [vmem:[%s1 + $0x218] sm:$0xff]
  %v179 = vld [vmem:[%s1 + $0x220] sm:$0xff]
  %v180 = vld [vmem:[%s1 + $0x228] sm:$0xff]
  %v181 = vld [vmem:[%s1 + $0x230] sm:$0xff]
  %v182 = vld [vmem:[%s1 + $0x238] sm:$0xff]
  %v183 = vld [vmem:[%s1 + $0x240] sm:$0xff]
  %v184 = vld [vmem:[%s1 + $0x248] sm:$0xff]
  %v185 = vld [vmem:[%s1 + $0x250] sm:$0xff]
  %v186 = vld [vmem:[%s1 + $0x258] sm:$0xff]
  %v187 = vld [vmem:[%s1 + $0x260] sm:$0xff]
  %v188 = vld [vmem:[%s1 + $0x268] sm:$0xff]
  %v189 = vld [vmem:[%s1 + $0x270] sm:$0xff]
  %v190 = vld [vmem:[%s1 + $0x278] sm:$0xff]
  %v191 = vld [vmem:[%s1 + $0x280] sm:$0xff]
  %v192 = vld [vmem:[%s1 + $0x288] sm:$0xff]
  %v193 = vld [vmem:[%s1 + $0x290] sm:$0xff]
  %v194 = vld [vmem:[%s1 + $0x298] sm:$0xff]
  %v195 = vld [vmem:[%s1 + $0x2a0] sm:$0xff]
  %v196 = vld [vmem:[%s1 + $0x2a8] sm:$0xff]
  %v197 = vld [vmem:[%s1 + $0x2b0] sm:$0xff]
  %v198 = vld [vmem:[%s1 + $0x2b8] sm:$0xff]
  %v199 = vld [vmem:[%s1 + $0x2c0] sm:$0xff]
  %v200 = vld [vmem:[%s1 + $0x2c8] sm:$0xff]
  %v201 = vld [vmem:[%s1 + $0x2d0] sm:$0xff]
  %v202 = vld [vmem:[%s1 + $0x2d8] sm:$0xff]
  %v203 = vld [vmem:[%s1 + $0x2e0] sm:$0xff]
  %v204 = vld [vmem:[%s1 + $0x2e8] sm:$0xff]
  %v205 = vld [vmem:[%s1 + $0x2f0] sm:$0xff]
  %v206 = vld [vmem:[%s1 + $0x2f8] sm:$0xff]
  %v207 = vld [vmem:[%s1 + $0x300] sm:$0xff]
  %v208 = vld [vmem:[%s1 + $0x308] sm:$0xff]
  %v209 = vld [vmem:[%s2] sm:$0x3]
  %v211 = vlaneseq
  %v212 = vshrl.u32 %v211, 7
  %v213 = vsub.s32 0, %v212
  %v214 = vrot.slane %v209, %v213
  %v215 = vlaneseq
  %v216 = vshrl.u32 %v215, 7
  %v217 = vsub.s32 1, %v216
  %v218 = vrot.slane %v209, %v217
  %v319 = vunpack.c.l.b16 %v111
  %v320 = vunpack.c.h.b16 %v111
  %v321 = vunpack.c.l.b16 %v112
  %v322 = vunpack.c.h.b16 %v112
  %v323 = vunpack.c.l.b16 %v113
  %v324 = vunpack.c.h.b16 %v113
  %v325 = vunpack.c.l.b16 %v114
  %v326 = vunpack.c.h.b16 %v114
  %v327 = vunpack.c.l.b16 %v115
  %v328 = vunpack.c.h.b16 %v115
  %v329 = vunpack.c.l.b16 %v116
  %v330 = vunpack.c.h.b16 %v116
  %v331 = vunpack.c.l.b16 %v117
  %v332 = vunpack.c.h.b16 %v117
  %v333 = vunpack.c.l.b16 %v118
  %v334 = vunpack.c.h.b16 %v118
  %v335 = vunpack.c.l.b16 %v119
  %v336 = vunpack.c.h.b16 %v119
  %v337 = vunpack.c.l.b16 %v120
  %v338 = vunpack.c.h.b16 %v120
  %v339 = vunpack.c.l.b16 %v121
  %v340 = vunpack.c.h.b16 %v121
  %v341 = vunpack.c.l.b16 %v122
  %v342 = vunpack.c.h.b16 %v122
  %v343 = vunpack.c.l.b16 %v123
  %v344 = vunpack.c.h.b16 %v123
  %v345 = vunpack.c.l.b16 %v124
  %v346 = vunpack.c.h.b16 %v124
  %v347 = vunpack.c.l.b16 %v125
  %v348 = vunpack.c.h.b16 %v125
  %v349 = vunpack.c.l.b16 %v126
  %v350 = vunpack.c.h.b16 %v126
  %v351 = vunpack.c.l.b16 %v127
  %v352 = vunpack.c.h.b16 %v127
  %v353 = vunpack.c.l.b16 %v128
  %v354 = vunpack.c.h.b16 %v128
  %v355 = vunpack.c.l.b16 %v129
  %v356 = vunpack.c.h.b16 %v129
  %v357 = vunpack.c.l.b16 %v130
  %v358 = vunpack.c.h.b16 %v130
  %v359 = vunpack.c.l.b16 %v131
  %v360 = vunpack.c.h.b16 %v131
  %v361 = vunpack.c.l.b16 %v132
  %v362 = vunpack.c.h.b16 %v132
  %v363 = vunpack.c.l.b16 %v133
  %v364 = vunpack.c.h.b16 %v133
  %v365 = vunpack.c.l.b16 %v134
  %v366 = vunpack.c.h.b16 %v134
  %v367 = vunpack.c.l.b16 %v135
  %v368 = vunpack.c.h.b16 %v135
  %v369 = vunpack.c.l.b16 %v136
  %v370 = vunpack.c.h.b16 %v136
  %v371 = vunpack.c.l.b16 %v137
  %v372 = vunpack.c.h.b16 %v137
  %v373 = vunpack.c.l.b16 %v138
  %v374 = vunpack.c.h.b16 %v138
  %v375 = vunpack.c.l.b16 %v139
  %v376 = vunpack.c.h.b16 %v139
  %v377 = vunpack.c.l.b16 %v140
  %v378 = vunpack.c.h.b16 %v140
  %v379 = vunpack.c.l.b16 %v141
  %v380 = vunpack.c.h.b16 %v141
  %v381 = vunpack.c.l.b16 %v142
  %v382 = vunpack.c.h.b16 %v142
  %v383 = vunpack.c.l.b16 %v143
  %v384 = vunpack.c.h.b16 %v143
  %v385 = vunpack.c.l.b16 %v144
  %v386 = vunpack.c.h.b16 %v144
  %v387 = vunpack.c.l.b16 %v145
  %v388 = vunpack.c.h.b16 %v145
  %v389 = vunpack.c.l.b16 %v146
  %v390 = vunpack.c.h.b16 %v146
  %v391 = vunpack.c.l.b16 %v147
  %v392 = vunpack.c.h.b16 %v147
  %v393 = vunpack.c.l.b16 %v148
  %v394 = vunpack.c.h.b16 %v148
  %v395 = vunpack.c.l.b16 %v149
  %v396 = vunpack.c.h.b16 %v149
  %v397 = vunpack.c.l.b16 %v150
  %v398 = vunpack.c.h.b16 %v150
  %v399 = vunpack.c.l.b16 %v151
  %v400 = vunpack.c.h.b16 %v151
  %v401 = vunpack.c.l.b16 %v152
  %v402 = vunpack.c.h.b16 %v152
  %v403 = vunpack.c.l.b16 %v153
  %v404 = vunpack.c.h.b16 %v153
  %v405 = vunpack.c.l.b16 %v154
  %v406 = vunpack.c.h.b16 %v154
  %v407 = vunpack.c.l.b16 %v155
  %v408 = vunpack.c.h.b16 %v155
  %v409 = vunpack.c.l.b16 %v156
  %v410 = vunpack.c.h.b16 %v156
  %v411 = vunpack.c.l.b16 %v157
  %v412 = vunpack.c.h.b16 %v157
  %v413 = vunpack.c.l.b16 %v158
  %v414 = vunpack.c.h.b16 %v158
  %v415 = vunpack.c.l.b16 %v159
  %v416 = vunpack.c.h.b16 %v159
  %v417 = vunpack.c.l.b16 %v160
  %v418 = vunpack.c.h.b16 %v160
  %v419 = vunpack.c.l.b16 %v161
  %v420 = vunpack.c.h.b16 %v161
  %v421 = vunpack.c.l.b16 %v162
  %v422 = vunpack.c.h.b16 %v162
  %v423 = vunpack.c.l.b16 %v163
  %v424 = vunpack.c.h.b16 %v163
  %v425 = vunpack.c.l.b16 %v164
  %v426 = vunpack.c.h.b16 %v164
  %v427 = vunpack.c.l.b16 %v165
  %v428 = vunpack.c.h.b16 %v165
  %v429 = vunpack.c.l.b16 %v166
  %v430 = vunpack.c.h.b16 %v166
  %v431 = vunpack.c.l.b16 %v167
  %v432 = vunpack.c.h.b16 %v167
  %v433 = vunpack.c.l.b16 %v168
  %v434 = vunpack.c.h.b16 %v168
  %v435 = vunpack.c.l.b16 %v169
  %v436 = vunpack.c.h.b16 %v169
  %v437 = vunpack.c.l.b16 %v170
  %v438 = vunpack.c.h.b16 %v170
  %v439 = vunpack.c.l.b16 %v171
  %v440 = vunpack.c.h.b16 %v171
  %v441 = vunpack.c.l.b16 %v172
  %v442 = vunpack.c.h.b16 %v172
  %v443 = vunpack.c.l.b16 %v173
  %v444 = vunpack.c.h.b16 %v173
  %v445 = vunpack.c.l.b16 %v174
  %v446 = vunpack.c.h.b16 %v174
  %v447 = vunpack.c.l.b16 %v175
  %v448 = vunpack.c.h.b16 %v175
  %v449 = vunpack.c.l.b16 %v176
  %v450 = vunpack.c.h.b16 %v176
  %v451 = vunpack.c.l.b16 %v177
  %v452 = vunpack.c.h.b16 %v177
  %v453 = vunpack.c.l.b16 %v178
  %v454 = vunpack.c.h.b16 %v178
  %v455 = vunpack.c.l.b16 %v179
  %v456 = vunpack.c.h.b16 %v179
  %v457 = vunpack.c.l.b16 %v180
  %v458 = vunpack.c.h.b16 %v180
  %v459 = vunpack.c.l.b16 %v181
  %v460 = vunpack.c.h.b16 %v181
  %v461 = vunpack.c.l.b16 %v182
  %v462 = vunpack.c.h.b16 %v182
  %v463 = vunpack.c.l.b16 %v183
  %v464 = vunpack.c.h.b16 %v183
  %v465 = vunpack.c.l.b16 %v184
  %v466 = vunpack.c.h.b16 %v184
  %v467 = vunpack.c.l.b16 %v185
  %v468 = vunpack.c.h.b16 %v185
  %v469 = vunpack.c.l.b16 %v186
  %v470 = vunpack.c.h.b16 %v186
  %v471 = vunpack.c.l.b16 %v187
  %v472 = vunpack.c.h.b16 %v187
  %v473 = vunpack.c.l.b16 %v188
  %v474 = vunpack.c.h.b16 %v188
  %v475 = vunpack.c.l.b16 %v189
  %v476 = vunpack.c.h.b16 %v189
  %v477 = vunpack.c.l.b16 %v190
  %v478 = vunpack.c.h.b16 %v190
  %v479 = vunpack.c.l.b16 %v191
  %v480 = vunpack.c.h.b16 %v191
  %v481 = vunpack.c.l.b16 %v192
  %v482 = vunpack.c.h.b16 %v192
  %v483 = vunpack.c.l.b16 %v193
  %v484 = vunpack.c.h.b16 %v193
  %v485 = vunpack.c.l.b16 %v194
  %v486 = vunpack.c.h.b16 %v194
  %v487 = vunpack.c.l.b16 %v195
  %v488 = vunpack.c.h.b16 %v195
  %v489 = vunpack.c.l.b16 %v196
  %v490 = vunpack.c.h.b16 %v196
  %v491 = vunpack.c.l.b16 %v197
  %v492 = vunpack.c.h.b16 %v197
  %v493 = vunpack.c.l.b16 %v198
  %v494 = vunpack.c.h.b16 %v198
  %v495 = vunpack.c.l.b16 %v199
  %v496 = vunpack.c.h.b16 %v199
  %v497 = vunpack.c.l.b16 %v200
  %v498 = vunpack.c.h.b16 %v200
  %v499 = vunpack.c.l.b16 %v201
  %v500 = vunpack.c.h.b16 %v201
  %v501 = vunpack.c.l.b16 %v202
  %v502 = vunpack.c.h.b16 %v202
  %v503 = vunpack.c.l.b16 %v203
  %v504 = vunpack.c.h.b16 %v203
  %v505 = vunpack.c.l.b16 %v204
  %v506 = vunpack.c.h.b16 %v204
  %v507 = vunpack.c.l.b16 %v205
  %v508 = vunpack.c.h.b16 %v205
  %v509 = vunpack.c.l.b16 %v206
  %v510 = vunpack.c.h.b16 %v206
  %v511 = vunpack.c.l.b16 %v207
  %v512 = vunpack.c.h.b16 %v207
  %v513 = vunpack.c.l.b16 %v208
  %v514 = vunpack.c.h.b16 %v208
  %v515 = vpack.c.b16 %v321, %v319
  %v516 = vpack.c.b16 %v322, %v320
  %v517 = vpack.c.b16 %v325, %v323
  %v518 = vpack.c.b16 %v326, %v324
  %v519 = vpack.c.b16 %v329, %v327
  %v520 = vpack.c.b16 %v330, %v328
  %v521 = vpack.c.b16 %v333, %v331
  %v522 = vpack.c.b16 %v334, %v332
  %v523 = vpack.c.b16 %v337, %v335
  %v524 = vpack.c.b16 %v338, %v336
  %v525 = vpack.c.b16 %v341, %v339
  %v526 = vpack.c.b16 %v342, %v340
  %v527 = vpack.c.b16 %v345, %v343
  %v528 = vpack.c.b16 %v346, %v344
  %v529 = vpack.c.b16 %v349, %v347
  %v530 = vpack.c.b16 %v350, %v348
  %v531 = vpack.c.b16 %v353, %v351
  %v532 = vpack.c.b16 %v354, %v352
  %v533 = vpack.c.b16 %v357, %v355
  %v534 = vpack.c.b16 %v358, %v356
  %v535 = vpack.c.b16 %v361, %v359
  %v536 = vpack.c.b16 %v362, %v360
  %v537 = vpack.c.b16 %v365, %v363
  %v538 = vpack.c.b16 %v366, %v364
  %v539 = vpack.c.b16 %v369, %v367
  %v540 = vpack.c.b16 %v370, %v368
  %v541 = vpack.c.b16 %v373, %v371
  %v542 = vpack.c.b16 %v374, %v372
  %v543 = vpack.c.b16 %v377, %v375
  %v544 = vpack.c.b16 %v378, %v376
  %v545 = vpack.c.b16 %v381, %v379
  %v546 = vpack.c.b16 %v382, %v380
  %v547 = vpack.c.b16 %v385, %v383
  %v548 = vpack.c.b16 %v386, %v384
  %v549 = vpack.c.b16 %v389, %v387
  %v550 = vpack.c.b16 %v390, %v388
  %v551 = vpack.c.b16 %v393, %v391
  %v552 = vpack.c.b16 %v394, %v392
  %v553 = vpack.c.b16 %v397, %v395
  %v554 = vpack.c.b16 %v398, %v396
  %v555 = vpack.c.b16 %v401, %v399
  %v556 = vpack.c.b16 %v402, %v400
  %v557 = vpack.c.b16 %v405, %v403
  %v558 = vpack.c.b16 %v406, %v404
  %v559 = vpack.c.b16 %v409, %v407
  %v560 = vpack.c.b16 %v410, %v408
  %v561 = vpack.c.b16 %v413, %v411
  %v562 = vpack.c.b16 %v414, %v412
  %v563 = vpack.c.b16 %v417, %v415
  %v564 = vpack.c.b16 %v418, %v416
  %v565 = vpack.c.b16 %v421, %v419
  %v566 = vpack.c.b16 %v422, %v420
  %v567 = vpack.c.b16 %v425, %v423
  %v568 = vpack.c.b16 %v426, %v424
  %v569 = vpack.c.b16 %v429, %v427
  %v570 = vpack.c.b16 %v430, %v428
  %v571 = vpack.c.b16 %v433, %v431
  %v572 = vpack.c.b16 %v434, %v432
  %v573 = vpack.c.b16 %v437, %v435
  %v574 = vpack.c.b16 %v438, %v436
  %v575 = vpack.c.b16 %v441, %v439
  %v576 = vpack.c.b16 %v442, %v440
  %v577 = vpack.c.b16 %v445, %v443
  %v578 = vpack.c.b16 %v446, %v444
  %v579 = vpack.c.b16 %v449, %v447
  %v580 = vpack.c.b16 %v450, %v448
  %v581 = vpack.c.b16 %v453, %v451
  %v582 = vpack.c.b16 %v454, %v452
  %v583 = vpack.c.b16 %v457, %v455
  %v584 = vpack.c.b16 %v458, %v456
  %v585 = vpack.c.b16 %v461, %v459
  %v586 = vpack.c.b16 %v462, %v460
  %v587 = vpack.c.b16 %v465, %v463
  %v588 = vpack.c.b16 %v466, %v464
  %v589 = vpack.c.b16 %v469, %v467
  %v590 = vpack.c.b16 %v470, %v468
  %v591 = vpack.c.b16 %v473, %v471
  %v592 = vpack.c.b16 %v474, %v472
  %v593 = vpack.c.b16 %v477, %v475
  %v594 = vpack.c.b16 %v478, %v476
  %v595 = vpack.c.b16 %v481, %v479
  %v596 = vpack.c.b16 %v482, %v480
  %v597 = vpack.c.b16 %v485, %v483
  %v598 = vpack.c.b16 %v486, %v484
  %v599 = vpack.c.b16 %v489, %v487
  %v600 = vpack.c.b16 %v490, %v488
  %v601 = vpack.c.b16 %v493, %v491
  %v602 = vpack.c.b16 %v494, %v492
  %v603 = vpack.c.b16 %v497, %v495
  %v604 = vpack.c.b16 %v498, %v496
  %v605 = vpack.c.b16 %v501, %v499
  %v606 = vpack.c.b16 %v502, %v500
  %v607 = vpack.c.b16 %v505, %v503
  %v608 = vpack.c.b16 %v506, %v504
  %v609 = vpack.c.b16 %v509, %v507
  %v610 = vpack.c.b16 %v510, %v508
  %v611 = vpack.c.b16 %v513, %v511
  %v612 = vpack.c.b16 %v514, %v512
  %vm711 = vcmask 130048
  %v713 = vsel %vm711, %v89, 0
  %v716 = vsel %vm711, %v96, 0
  %v719 = vsel %vm711, %v103, 0
  %v722 = vsel %vm711, %v110, 0
  %724 = vmatprep.subr.bf16.mxu0 %v516
  %725 = vmatpush1.bf16.msra.mxu0 %v515
  %726 = vmatprep.subr.bf16.mxu0 %v518
  %727 = vmatpush1.bf16.msra.mxu0 %v517
  %728 = vmatprep.subr.bf16.mxu0 %v520
  %729 = vmatpush1.bf16.msra.mxu0 %v519
  %730 = vmatprep.subr.bf16.mxu0 %v522
  %731 = vmatpush1.bf16.msra.mxu0 %v521
  %732 = vmatprep.subr.bf16.mxu0 %v524
  %733 = vmatpush1.bf16.msra.mxu0 %v523
  %734 = vmatprep.subr.bf16.mxu0 %v526
  %735 = vmatpush1.bf16.msra.mxu0 %v525
  %736 = vmatprep.subr.bf16.mxu0 %v528
  %737 = vmatpush1.bf16.msra.mxu0 %v527
  %738 = vmatprep.subr.bf16.mxu0 %v530
  %739 = vmatpush1.bf16.msra.mxu0 %v529
  %740 = vmatprep.subr.bf16.mxu0 %v532
  %741 = vmatpush1.bf16.msra.mxu0 %v531
  %742 = vmatprep.subr.bf16.mxu0 %v534
  %743 = vmatpush1.bf16.msra.mxu0 %v533
  %744 = vmatprep.subr.bf16.mxu0 %v536
  %745 = vmatpush1.bf16.msra.mxu0 %v535
  %746 = vmatprep.subr.bf16.mxu0 %v538
  %747 = vmatpush1.bf16.msra.mxu0 %v537
  %748 = vmatprep.subr.bf16.mxu0 %v540
  %749 = vmatpush1.bf16.msra.mxu0 %v539
  %750 = vmatprep.subr.bf16.mxu0 %v542
  %751 = vmatpush1.bf16.msra.mxu0 %v541
  %752 = vmatprep.subr.bf16.mxu0 %v544
  %753 = vmatpush1.bf16.msra.mxu0 %v543
  %754 = vmatprep.subr.bf16.mxu0 %v546
  %755 = vmatpush1.bf16.msra.mxu0 %v545
  %756 = vmatprep.mubr.bf16.mxu0 %v84
  %757 = vmatmul.mubr.bf16.gmra.mrb[0].mxu0 %v83
  %v758 = vpop.f32.mrb[0].mxu0
  %v759 = vadd.f32 %v214, %v758
  %v760 = vpop.f32.mrb[0].mxu0
  %v761 = vadd.f32 %v218, %v760
  %v762 = vpop.f32.mrb[0].mxu0
  %v763 = vadd.f32 %v214, %v762
  %v764 = vpop.f32.mrb[0].mxu0
  %v765 = vadd.f32 %v218, %v764
  %766 = vmatprep.mubr.bf16.mxu0 %v91
  %767 = vmatmul.mubr.bf16.gmra.mrb[0].mxu0 %v90
  %v768 = vpop.f32.mrb[0].mxu0
  %v769 = vadd.f32 %v214, %v768
  %v770 = vpop.f32.mrb[0].mxu0
  %v771 = vadd.f32 %v218, %v770
  %v772 = vpop.f32.mrb[0].mxu0
  %v773 = vadd.f32 %v214, %v772
  %v774 = vpop.f32.mrb[0].mxu0
  %v775 = vadd.f32 %v218, %v774
  %776 = vmatprep.mubr.bf16.mxu0 %v98
  %777 = vmatmul.mubr.bf16.gmra.mrb[0].mxu0 %v97
  %v778 = vpop.f32.mrb[0].mxu0
  %v779 = vadd.f32 %v214, %v778
  %v780 = vpop.f32.mrb[0].mxu0
  %v781 = vadd.f32 %v218, %v780
  %v782 = vpop.f32.mrb[0].mxu0
  %v783 = vadd.f32 %v214, %v782
  %v784 = vpop.f32.mrb[0].mxu0
  %v785 = vadd.f32 %v218, %v784
  %786 = vmatprep.mubr.bf16.mxu0 %v105
  %787 = vmatmul.mubr.bf16.gmra.mrb[0].mxu0 %v104
  %v788 = vpop.f32.mrb[0].mxu0
  %v789 = vadd.f32 %v214, %v788
  %v790 = vpop.f32.mrb[0].mxu0
  %v791 = vadd.f32 %v218, %v790
  %v792 = vpop.f32.mrb[0].mxu0
  %v793 = vadd.f32 %v214, %v792
  %v794 = vpop.f32.mrb[0].mxu0
  %v795 = vadd.f32 %v218, %v794
  %796 = vdwg.mxu0
  %797 = vmatprep.subr.bf16.mxu0 %v548
  %798 = vmatpush1.bf16.msra.mxu0 %v547
  %799 = vmatprep.subr.bf16.mxu0 %v550
  %800 = vmatpush1.bf16.msra.mxu0 %v549
  %801 = vmatprep.subr.bf16.mxu0 %v552
  %802 = vmatpush1.bf16.msra.mxu0 %v551
  %803 = vmatprep.subr.bf16.mxu0 %v554
  %804 = vmatpush1.bf16.msra.mxu0 %v553
  %805 = vmatprep.subr.bf16.mxu0 %v556
  %806 = vmatpush1.bf16.msra.mxu0 %v555
  %807 = vmatprep.subr.bf16.mxu0 %v558
  %808 = vmatpush1.bf16.msra.mxu0 %v557
  %809 = vmatprep.subr.bf16.mxu0 %v560
  %810 = vmatpush1.bf16.msra.mxu0 %v559
  %811 = vmatprep.subr.bf16.mxu0 %v562
  %812 = vmatpush1.bf16.msra.mxu0 %v561
  %813 = vmatprep.subr.bf16.mxu0 %v564
  %814 = vmatpush1.bf16.msra.mxu0 %v563
  %815 = vmatprep.subr.bf16.mxu0 %v566
  %816 = vmatpush1.bf16.msra.mxu0 %v565
  %817 = vmatprep.subr.bf16.mxu0 %v568
  %818 = vmatpush1.bf16.msra.mxu0 %v567
  %819 = vmatprep.subr.bf16.mxu0 %v570
  %820 = vmatpush1.bf16.msra.mxu0 %v569
  %821 = vmatprep.subr.bf16.mxu0 %v572
  %822 = vmatpush1.bf16.msra.mxu0 %v571
  %823 = vmatprep.subr.bf16.mxu0 %v574
  %824 = vmatpush1.bf16.msra.mxu0 %v573
  %825 = vmatprep.subr.bf16.mxu0 %v576
  %826 = vmatpush1.bf16.msra.mxu0 %v575
  %827 = vmatprep.subr.bf16.mxu0 %v578
  %828 = vmatpush1.bf16.msra.mxu0 %v577
  %829 = vmatprep.mubr.bf16.mxu0 %v86
  %830 = vmatmul.mubr.bf16.gmra.mrb[0].mxu0 %v85
  %v831 = vpop.f32.mrb[0].mxu0
  %v832 = vadd.f32 %v759, %v831
  %v833 = vpop.f32.mrb[0].mxu0
  %v834 = vadd.f32 %v761, %v833
  %v835 = vpop.f32.mrb[0].mxu0
  %v836 = vadd.f32 %v763, %v835
  %v837 = vpop.f32.mrb[0].mxu0
  %v838 = vadd.f32 %v765, %v837
  %839 = vmatprep.mubr.bf16.mxu0 %v93
  %840 = vmatmul.mubr.bf16.gmra.mrb[0].mxu0 %v92
  %v841 = vpop.f32.mrb[0].mxu0
  %v842 = vadd.f32 %v769, %v841
  %v843 = vpop.f32.mrb[0].mxu0
  %v844 = vadd.f32 %v771, %v843
  %v845 = vpop.f32.mrb[0].mxu0
  %v846 = vadd.f32 %v773, %v845
  %v847 = vpop.f32.mrb[0].mxu0
  %v848 = vadd.f32 %v775, %v847
  %849 = vmatprep.mubr.bf16.mxu0 %v100
  %850 = vmatmul.mubr.bf16.gmra.mrb[0].mxu0 %v99
  %v851 = vpop.f32.mrb[0].mxu0
  %v852 = vadd.f32 %v779, %v851
  %v853 = vpop.f32.mrb[0].mxu0
  %v854 = vadd.f32 %v781, %v853
  %v855 = vpop.f32.mrb[0].mxu0
  %v856 = vadd.f32 %v783, %v855
  %v857 = vpop.f32.mrb[0].mxu0
  %v858 = vadd.f32 %v785, %v857
  %859 = vmatprep.mubr.bf16.mxu0 %v107
  %860 = vmatmul.mubr.bf16.gmra.mrb[0].mxu0 %v106
  %v861 = vpop.f32.mrb[0].mxu0
  %v862 = vadd.f32 %v789, %v861
  %v863 = vpop.f32.mrb[0].mxu0
  %v864 = vadd.f32 %v791, %v863
  %v865 = vpop.f32.mrb[0].mxu0
  %v866 = vadd.f32 %v793, %v865
  %v867 = vpop.f32.mrb[0].mxu0
  %v868 = vadd.f32 %v795, %v867
  %869 = vdwg.mxu0
  %870 = vmatprep.subr.bf16.mxu0 %v580
  %871 = vmatpush1.bf16.msra.mxu0 %v579
  %872 = vmatprep.subr.bf16.mxu0 %v582
  %873 = vmatpush1.bf16.msra.mxu0 %v581
  %874 = vmatprep.subr.bf16.mxu0 %v584
  %875 = vmatpush1.bf16.msra.mxu0 %v583
  %876 = vmatprep.subr.bf16.mxu0 %v586
  %877 = vmatpush1.bf16.msra.mxu0 %v585
  %878 = vmatprep.subr.bf16.mxu0 %v588
  %879 = vmatpush1.bf16.msra.mxu0 %v587
  %880 = vmatprep.subr.bf16.mxu0 %v590
  %881 = vmatpush1.bf16.msra.mxu0 %v589
  %882 = vmatprep.subr.bf16.mxu0 %v592
  %883 = vmatpush1.bf16.msra.mxu0 %v591
  %884 = vmatprep.subr.bf16.mxu0 %v594
  %885 = vmatpush1.bf16.msra.mxu0 %v593
  %886 = vmatprep.subr.bf16.mxu0 %v596
  %887 = vmatpush1.bf16.msra.mxu0 %v595
  %888 = vmatprep.subr.bf16.mxu0 %v598
  %889 = vmatpush1.bf16.msra.mxu0 %v597
  %890 = vmatprep.subr.bf16.mxu0 %v600
  %891 = vmatpush1.bf16.msra.mxu0 %v599
  %892 = vmatprep.subr.bf16.mxu0 %v602
  %893 = vmatpush1.bf16.msra.mxu0 %v601
  %894 = vmatprep.subr.bf16.mxu0 %v604
  %895 = vmatpush1.bf16.msra.mxu0 %v603
  %896 = vmatprep.subr.bf16.mxu0 %v606
  %897 = vmatpush1.bf16.msra.mxu0 %v605
  %898 = vmatprep.subr.bf16.mxu0 %v608
  %899 = vmatpush1.bf16.msra.mxu0 %v607
  %900 = vmatprep.subr.bf16.mxu0 %v610
  %901 = vmatpush1.bf16.msra.mxu0 %v609
  %902 = vmatprep.mubr.bf16.mxu0 %v88
  %903 = vmatmul.mubr.bf16.gmra.mrb[0].mxu0 %v87
  %v904 = vpop.f32.mrb[0].mxu0
  %v905 = vadd.f32 %v832, %v904
  %v906 = vpop.f32.mrb[0].mxu0
  %v907 = vadd.f32 %v834, %v906
  %v908 = vpop.f32.mrb[0].mxu0
  %v909 = vadd.f32 %v836, %v908
  %v910 = vpop.f32.mrb[0].mxu0
  %v911 = vadd.f32 %v838, %v910
  %912 = vmatprep.mubr.bf16.mxu0 %v95
  %913 = vmatmul.mubr.bf16.gmra.mrb[0].mxu0 %v94
  %v914 = vpop.f32.mrb[0].mxu0
  %v915 = vadd.f32 %v842, %v914
  %v916 = vpop.f32.mrb[0].mxu0
  %v917 = vadd.f32 %v844, %v916
  %v918 = vpop.f32.mrb[0].mxu0
  %v919 = vadd.f32 %v846, %v918
  %v920 = vpop.f32.mrb[0].mxu0
  %v921 = vadd.f32 %v848, %v920
  %922 = vmatprep.mubr.bf16.mxu0 %v102
  %923 = vmatmul.mubr.bf16.gmra.mrb[0].mxu0 %v101
  %v924 = vpop.f32.mrb[0].mxu0
  %v925 = vadd.f32 %v852, %v924
  %v926 = vpop.f32.mrb[0].mxu0
  %v927 = vadd.f32 %v854, %v926
  %v928 = vpop.f32.mrb[0].mxu0
  %v929 = vadd.f32 %v856, %v928
  %v930 = vpop.f32.mrb[0].mxu0
  %v931 = vadd.f32 %v858, %v930
  %932 = vmatprep.mubr.bf16.mxu0 %v109
  %933 = vmatmul.mubr.bf16.gmra.mrb[0].mxu0 %v108
  %v934 = vpop.f32.mrb[0].mxu0
  %v935 = vadd.f32 %v862, %v934
  %v936 = vpop.f32.mrb[0].mxu0
  %v937 = vadd.f32 %v864, %v936
  %v938 = vpop.f32.mrb[0].mxu0
  %v939 = vadd.f32 %v866, %v938
  %v940 = vpop.f32.mrb[0].mxu0
  %v941 = vadd.f32 %v868, %v940
  %942 = vdwg.mxu0
  %943 = vmatprep.subr.bf16.mxu0 %v612
  %944 = vmatpush1.bf16.msra.mxu0 %v611
  %945 = vmatprep.subr.bf16.mxu0 0
  %946 = vmatpush1.bf16.msra.mxu0 0
  %947 = vmatprep.subr.bf16.mxu0 0
  %948 = vmatpush1.bf16.msra.mxu0 0
  %949 = vmatprep.subr.bf16.mxu0 0
  %950 = vmatpush1.bf16.msra.mxu0 0
  %951 = vmatprep.subr.bf16.mxu0 0
  %952 = vmatpush1.bf16.msra.mxu0 0
  %953 = vmatprep.subr.bf16.mxu0 0
  %954 = vmatpush1.bf16.msra.mxu0 0
  %955 = vmatprep.subr.bf16.mxu0 0
  %956 = vmatpush1.bf16.msra.mxu0 0
  %957 = vmatprep.subr.bf16.mxu0 0
  %958 = vmatpush1.bf16.msra.mxu0 0
  %959 = vmatprep.subr.bf16.mxu0 0
  %960 = vmatpush1.bf16.msra.mxu0 0
  %961 = vmatprep.subr.bf16.mxu0 0
  %962 = vmatpush1.bf16.msra.mxu0 0
  %963 = vmatprep.subr.bf16.mxu0 0
  %964 = vmatpush1.bf16.msra.mxu0 0
  %965 = vmatprep.subr.bf16.mxu0 0
  %966 = vmatpush1.bf16.msra.mxu0 0
  %967 = vmatprep.subr.bf16.mxu0 0
  %968 = vmatpush1.bf16.msra.mxu0 0
  %969 = vmatprep.subr.bf16.mxu0 0
  %970 = vmatpush1.bf16.msra.mxu0 0
  %971 = vmatprep.subr.bf16.mxu0 0
  %972 = vmatpush1.bf16.msra.mxu0 0
  %973 = vmatprep.subr.bf16.mxu0 0
  %974 = vmatpush1.bf16.msra.mxu0 0
  %975 = vmatprep.mubr.bf16.mxu0 0
  %976 = vmatmul.mubr.bf16.gmra.mrb[0].mxu0 %v713
  %v977 = vpop.f32.mrb[0].mxu0
  %v978 = vadd.f32 %v905, %v977
  %v979 = vpop.f32.mrb[0].mxu0
  %v980 = vadd.f32 %v907, %v979
  %v981 = vpop.f32.mrb[0].mxu0
  %v982 = vadd.f32 %v909, %v981
  %v983 = vpop.f32.mrb[0].mxu0
  %v984 = vadd.f32 %v911, %v983
  %985 = vmatprep.mubr.bf16.mxu0 0
  %986 = vmatmul.mubr.bf16.gmra.mrb[0].mxu0 %v716
  %v987 = vpop.f32.mrb[0].mxu0
  %v988 = vadd.f32 %v915, %v987
  %v989 = vpop.f32.mrb[0].mxu0
  %v990 = vadd.f32 %v917, %v989
  %v991 = vpop.f32.mrb[0].mxu0
  %v992 = vadd.f32 %v919, %v991
  %v993 = vpop.f32.mrb[0].mxu0
  %v994 = vadd.f32 %v921, %v993
  %995 = vmatprep.mubr.bf16.mxu0 0
  %996 = vmatmul.mubr.bf16.gmra.mrb[0].mxu0 %v719
  %v997 = vpop.f32.mrb[0].mxu0
  %v998 = vadd.f32 %v925, %v997
  %v999 = vpop.f32.mrb[0].mxu0
  %v1000 = vadd.f32 %v927, %v999
  %v1001 = vpop.f32.mrb[0].mxu0
  %v1002 = vadd.f32 %v929, %v1001
  %v1003 = vpop.f32.mrb[0].mxu0
  %v1004 = vadd.f32 %v931, %v1003
  %1005 = vmatprep.mubr.bf16.mxu0 0
  %1006 = vmatmul.mubr.bf16.gmra.mrb[0].mxu0 %v722
  %v1007 = vpop.f32.mrb[0].mxu0
  %v1008 = vadd.f32 %v935, %v1007
  %v1009 = vpop.f32.mrb[0].mxu0
  %v1010 = vadd.f32 %v937, %v1009
  %v1011 = vpop.f32.mrb[0].mxu0
  %v1012 = vadd.f32 %v939, %v1011
  %v1013 = vpop.f32.mrb[0].mxu0
  %v1014 = vadd.f32 %v941, %v1013
  %1015 = vdwg.mxu0
  %v1016 = vmax.f32 %v978, 0.0
  %v1017 = vmax.f32 %v980, 0.0
  %v1018 = vmax.f32 %v982, 0.0
  %v1019 = vmax.f32 %v984, 0.0
  %v1020 = vmax.f32 %v988, 0.0
  %v1021 = vmax.f32 %v990, 0.0
  %v1022 = vmax.f32 %v992, 0.0
  %v1023 = vmax.f32 %v994, 0.0
  %v1024 = vmax.f32 %v998, 0.0
  %v1025 = vmax.f32 %v1000, 0.0
  %v1026 = vmax.f32 %v1002, 0.0
  %v1027 = vmax.f32 %v1004, 0.0
  %v1028 = vmax.f32 %v1008, 0.0
  %v1029 = vmax.f32 %v1010, 0.0
  %v1030 = vmax.f32 %v1012, 0.0
  %v1031 = vmax.f32 %v1014, 0.0
  %v1032 = vpack.c.bf16 %v1018, %v1016
  %v1033 = vpack.c.bf16 %v1019, %v1017
  %v1034 = vpack.c.bf16 %v1022, %v1020
  %v1035 = vpack.c.bf16 %v1023, %v1021
  %v1036 = vpack.c.bf16 %v1026, %v1024
  %v1037 = vpack.c.bf16 %v1027, %v1025
  %v1038 = vpack.c.bf16 %v1030, %v1028
  %v1039 = vpack.c.bf16 %v1031, %v1029
  %v1040 = vld [vmem:[%s3] sm:$0xf]
  %v1041 = vld [vmem:[%s3 + $0x4] sm:$0xf]
  %v1042 = vld [vmem:[%s3 + $0x8] sm:$0xf]
  %v1043 = vld [vmem:[%s3 + $0xc] sm:$0xf]
  %v1044 = vld [vmem:[%s3 + $0x10] sm:$0xf]
  %v1045 = vld [vmem:[%s3 + $0x14] sm:$0xf]
  %v1046 = vld [vmem:[%s3 + $0x18] sm:$0xf]
  %v1047 = vld [vmem:[%s3 + $0x1c] sm:$0xf]
  %v1048 = vld [vmem:[%s3 + $0x20] sm:$0xf]
  %v1049 = vld [vmem:[%s3 + $0x24] sm:$0xf]
  %v1050 = vld [vmem:[%s3 + $0x28] sm:$0xf]
  %v1051 = vld [vmem:[%s3 + $0x2c] sm:$0xf]
  %v1052 = vld [vmem:[%s3 + $0x30] sm:$0xf]
  %v1053 = vld [vmem:[%s3 + $0x34] sm:$0xf]
  %v1054 = vld [vmem:[%s3 + $0x38] sm:$0xf]
  %v1055 = vld [vmem:[%s3 + $0x3c] sm:$0xf]
  %v1056 = vld [vmem:[%s3 + $0x40] sm:$0xf]
  %v1057 = vld [vmem:[%s3 + $0x44] sm:$0xf]
  %v1058 = vld [vmem:[%s3 + $0x48] sm:$0xf]
  %v1059 = vld [vmem:[%s3 + $0x4c] sm:$0xf]
  %v1060 = vld [vmem:[%s3 + $0x50] sm:$0xf]
  %v1061 = vld [vmem:[%s3 + $0x54] sm:$0xf]
  %v1062 = vld [vmem:[%s3 + $0x58] sm:$0xf]
  %v1063 = vld [vmem:[%s3 + $0x5c] sm:$0xf]
  %v1064 = vld [vmem:[%s3 + $0x60] sm:$0xf]
  %v1065 = vld [vmem:[%s3 + $0x64] sm:$0xf]
  %v1066 = vld [vmem:[%s3 + $0x68] sm:$0xf]
  %v1067 = vld [vmem:[%s3 + $0x6c] sm:$0xf]
  %v1068 = vld [vmem:[%s3 + $0x70] sm:$0xf]
  %v1069 = vld [vmem:[%s3 + $0x74] sm:$0xf]
  %v1070 = vld [vmem:[%s3 + $0x78] sm:$0xf]
  %v1071 = vld [vmem:[%s3 + $0x7c] sm:$0xf]
  %v1072 = vld [vmem:[%s4] sm:$0x1]
  %v1074 = vlaneseq
  %v1075 = vshrl.u32 %v1074, 7
  %v1076 = vsub.s32 0, %v1075
  %v1077 = vrot.slane %v1072, %v1076
  %v1111 = vunpack.c.l.b16 %v1040
  %v1112 = vunpack.c.l.b16 %v1041
  %v1113 = vunpack.c.l.b16 %v1042
  %v1114 = vunpack.c.l.b16 %v1043
  %v1115 = vunpack.c.l.b16 %v1044
  %v1116 = vunpack.c.l.b16 %v1045
  %v1117 = vunpack.c.l.b16 %v1046
  %v1118 = vunpack.c.l.b16 %v1047
  %v1119 = vunpack.c.l.b16 %v1048
  %v1120 = vunpack.c.l.b16 %v1049
  %v1121 = vunpack.c.l.b16 %v1050
  %v1122 = vunpack.c.l.b16 %v1051
  %v1123 = vunpack.c.l.b16 %v1052
  %v1124 = vunpack.c.l.b16 %v1053
  %v1125 = vunpack.c.l.b16 %v1054
  %v1126 = vunpack.c.l.b16 %v1055
  %v1127 = vunpack.c.l.b16 %v1056
  %v1128 = vunpack.c.l.b16 %v1057
  %v1129 = vunpack.c.l.b16 %v1058
  %v1130 = vunpack.c.l.b16 %v1059
  %v1131 = vunpack.c.l.b16 %v1060
  %v1132 = vunpack.c.l.b16 %v1061
  %v1133 = vunpack.c.l.b16 %v1062
  %v1134 = vunpack.c.l.b16 %v1063
  %v1135 = vunpack.c.l.b16 %v1064
  %v1136 = vunpack.c.l.b16 %v1065
  %v1137 = vunpack.c.l.b16 %v1066
  %v1138 = vunpack.c.l.b16 %v1067
  %v1139 = vunpack.c.l.b16 %v1068
  %v1140 = vunpack.c.l.b16 %v1069
  %v1141 = vunpack.c.l.b16 %v1070
  %v1142 = vunpack.c.l.b16 %v1071
  %v1143 = vpack.c.b16 %v1112, %v1111
  %v1144 = vpack.c.b16 %v1114, %v1113
  %v1145 = vpack.c.b16 %v1116, %v1115
  %v1146 = vpack.c.b16 %v1118, %v1117
  %v1147 = vpack.c.b16 %v1120, %v1119
  %v1148 = vpack.c.b16 %v1122, %v1121
  %v1149 = vpack.c.b16 %v1124, %v1123
  %v1150 = vpack.c.b16 %v1126, %v1125
  %v1151 = vpack.c.b16 %v1128, %v1127
  %v1152 = vpack.c.b16 %v1130, %v1129
  %v1153 = vpack.c.b16 %v1132, %v1131
  %v1154 = vpack.c.b16 %v1134, %v1133
  %v1155 = vpack.c.b16 %v1136, %v1135
  %v1156 = vpack.c.b16 %v1138, %v1137
  %v1157 = vpack.c.b16 %v1140, %v1139
  %v1158 = vpack.c.b16 %v1142, %v1141
  %1175 = vmatprep.subr.bf16.mxu0 0
  %1176 = vmatpush1.bf16.msra.mxu0 %v1143
  %1177 = vmatprep.subr.bf16.mxu0 0
  %1178 = vmatpush1.bf16.msra.mxu0 %v1144
  %1179 = vmatprep.subr.bf16.mxu0 0
  %1180 = vmatpush1.bf16.msra.mxu0 %v1145
  %1181 = vmatprep.subr.bf16.mxu0 0
  %1182 = vmatpush1.bf16.msra.mxu0 %v1146
  %1183 = vmatprep.subr.bf16.mxu0 0
  %1184 = vmatpush1.bf16.msra.mxu0 %v1147
  %1185 = vmatprep.subr.bf16.mxu0 0
  %1186 = vmatpush1.bf16.msra.mxu0 %v1148
  %1187 = vmatprep.subr.bf16.mxu0 0
  %1188 = vmatpush1.bf16.msra.mxu0 %v1149
  %1189 = vmatprep.subr.bf16.mxu0 0
  %1190 = vmatpush1.bf16.msra.mxu0 %v1150
  %1191 = vmatprep.subr.bf16.mxu0 0
  %1192 = vmatpush1.bf16.msra.mxu0 %v1151
  %1193 = vmatprep.subr.bf16.mxu0 0
  %1194 = vmatpush1.bf16.msra.mxu0 %v1152
  %1195 = vmatprep.subr.bf16.mxu0 0
  %1196 = vmatpush1.bf16.msra.mxu0 %v1153
  %1197 = vmatprep.subr.bf16.mxu0 0
  %1198 = vmatpush1.bf16.msra.mxu0 %v1154
  %1199 = vmatprep.subr.bf16.mxu0 0
  %1200 = vmatpush1.bf16.msra.mxu0 %v1155
  %1201 = vmatprep.subr.bf16.mxu0 0
  %1202 = vmatpush1.bf16.msra.mxu0 %v1156
  %1203 = vmatprep.subr.bf16.mxu0 0
  %1204 = vmatpush1.bf16.msra.mxu0 %v1157
  %1205 = vmatprep.subr.bf16.mxu0 0
  %1206 = vmatpush1.bf16.msra.mxu0 %v1158
  %1207 = vmatprep.mubr.bf16.mxu0 %v1033
  %1208 = vmatmul.mubr.bf16.gmra.mrb[0].mxu0 %v1032
  %v1209 = vpop.f32.mrb[0].mxu0
  %v1210 = vadd.f32 %v1077, %v1209
  %v1211 = vpop.f32.mrb[0].mxu0
  %v1212 = vpop.f32.mrb[0].mxu0
  %v1213 = vadd.f32 %v1077, %v1212
  %v1214 = vpop.f32.mrb[0].mxu0
  %1215 = vmatprep.mubr.bf16.mxu0 %v1035
  %1216 = vmatmul.mubr.bf16.gmra.mrb[0].mxu0 %v1034
  %v1217 = vpop.f32.mrb[0].mxu0
  %v1218 = vadd.f32 %v1077, %v1217
  %v1219 = vpop.f32.mrb[0].mxu0
  %v1220 = vpop.f32.mrb[0].mxu0
  %v1221 = vadd.f32 %v1077, %v1220
  %v1222 = vpop.f32.mrb[0].mxu0
  %1223 = vmatprep.mubr.bf16.mxu0 %v1037
  %1224 = vmatmul.mubr.bf16.gmra.mrb[0].mxu0 %v1036
  %v1225 = vpop.f32.mrb[0].mxu0
  %v1226 = vadd.f32 %v1077, %v1225
  %v1227 = vpop.f32.mrb[0].mxu0
  %v1228 = vpop.f32.mrb[0].mxu0
  %v1229 = vadd.f32 %v1077, %v1228
  %v1230 = vpop.f32.mrb[0].mxu0
  %1231 = vmatprep.mubr.bf16.mxu0 %v1039
  %1232 = vmatmul.mubr.bf16.gmra.mrb[0].mxu0 %v1038
  %v1233 = vpop.f32.mrb[0].mxu0
  %v1234 = vadd.f32 %v1077, %v1233
  %v1235 = vpop.f32.mrb[0].mxu0
  %v1236 = vpop.f32.mrb[0].mxu0
  %v1237 = vadd.f32 %v1077, %v1236
  %v1238 = vpop.f32.mrb[0].mxu0
  %1239 = vdwg.mxu0
  %v1240 = vmax.f32 %v1210, 0.0
  %v1241 = vmax.f32 %v1213, 0.0
  %v1242 = vmax.f32 %v1218, 0.0
  %v1243 = vmax.f32 %v1221, 0.0
  %v1244 = vmax.f32 %v1226, 0.0
  %v1245 = vmax.f32 %v1229, 0.0
  %v1246 = vmax.f32 %v1234, 0.0
  %v1247 = vmax.f32 %v1237, 0.0
  %v1248 = vpack.c.bf16 %v1241, %v1240
  %v1249 = vpack.c.bf16 %v1243, %v1242
  %v1250 = vpack.c.bf16 %v1245, %v1244
  %v1251 = vpack.c.bf16 %v1247, %v1246
  %v1252 = vld [vmem:[%s5] sm:$0xf]
  %v1253 = vld [vmem:[%s5 + $0x4] sm:$0xf]
  %v1254 = vld [vmem:[%s5 + $0x8] sm:$0xf]
  %v1255 = vld [vmem:[%s5 + $0xc] sm:$0xf]
  %v1256 = vld [vmem:[%s5 + $0x10] sm:$0xf]
  %v1257 = vld [vmem:[%s5 + $0x14] sm:$0xf]
  %v1258 = vld [vmem:[%s5 + $0x18] sm:$0xf]
  %v1259 = vld [vmem:[%s5 + $0x1c] sm:$0xf]
  %v1260 = vld [vmem:[%s5 + $0x20] sm:$0xf]
  %v1261 = vld [vmem:[%s5 + $0x24] sm:$0xf]
  %v1262 = vld [vmem:[%s5 + $0x28] sm:$0xf]
  %v1263 = vld [vmem:[%s5 + $0x2c] sm:$0xf]
  %v1264 = vld [vmem:[%s5 + $0x30] sm:$0xf]
  %v1265 = vld [vmem:[%s5 + $0x34] sm:$0xf]
  %v1266 = vld [vmem:[%s5 + $0x38] sm:$0xf]
  %v1267 = vld [vmem:[%s5 + $0x3c] sm:$0xf]
  %v1268 = vld [vmem:[%s6] sm:$0x1]
  %v1270 = vlaneseq
  %v1271 = vshrl.u32 %v1270, 7
  %v1272 = vsub.s32 0, %v1271
  %v1273 = vrot.slane %v1268, %v1272
  %v1291 = vunpack.c.l.b16 %v1252
  %v1292 = vunpack.c.l.b16 %v1253
  %v1293 = vunpack.c.l.b16 %v1254
  %v1294 = vunpack.c.l.b16 %v1255
  %v1295 = vunpack.c.l.b16 %v1256
  %v1296 = vunpack.c.l.b16 %v1257
  %v1297 = vunpack.c.l.b16 %v1258
  %v1298 = vunpack.c.l.b16 %v1259
  %v1299 = vunpack.c.l.b16 %v1260
  %v1300 = vunpack.c.l.b16 %v1261
  %v1301 = vunpack.c.l.b16 %v1262
  %v1302 = vunpack.c.l.b16 %v1263
  %v1303 = vunpack.c.l.b16 %v1264
  %v1304 = vunpack.c.l.b16 %v1265
  %v1305 = vunpack.c.l.b16 %v1266
  %v1306 = vunpack.c.l.b16 %v1267
  %v1307 = vpack.c.b16 %v1292, %v1291
  %v1308 = vpack.c.b16 %v1294, %v1293
  %v1309 = vpack.c.b16 %v1296, %v1295
  %v1310 = vpack.c.b16 %v1298, %v1297
  %v1311 = vpack.c.b16 %v1300, %v1299
  %v1312 = vpack.c.b16 %v1302, %v1301
  %v1313 = vpack.c.b16 %v1304, %v1303
  %v1314 = vpack.c.b16 %v1306, %v1305
  %1323 = vmatprep.subr.bf16.mxu0 0
  %1324 = vmatpush1.bf16.msra.mxu0 %v1307
  %1325 = vmatprep.subr.bf16.mxu0 0
  %1326 = vmatpush1.bf16.msra.mxu0 %v1308
  %1327 = vmatprep.subr.bf16.mxu0 0
  %1328 = vmatpush1.bf16.msra.mxu0 %v1309
  %1329 = vmatprep.subr.bf16.mxu0 0
  %1330 = vmatpush1.bf16.msra.mxu0 %v1310
  %1331 = vmatprep.subr.bf16.mxu0 0
  %1332 = vmatpush1.bf16.msra.mxu0 %v1311
  %1333 = vmatprep.subr.bf16.mxu0 0
  %1334 = vmatpush1.bf16.msra.mxu0 %v1312
  %1335 = vmatprep.subr.bf16.mxu0 0
  %1336 = vmatpush1.bf16.msra.mxu0 %v1313
  %1337 = vmatprep.subr.bf16.mxu0 0
  %1338 = vmatpush1.bf16.msra.mxu0 %v1314
  %1339 = vmatprep.subr.bf16.mxu0 0
  %1340 = vmatpush1.bf16.msra.mxu0 0
  %1341 = vmatprep.subr.bf16.mxu0 0
  %1342 = vmatpush1.bf16.msra.mxu0 0
  %1343 = vmatprep.subr.bf16.mxu0 0
  %1344 = vmatpush1.bf16.msra.mxu0 0
  %1345 = vmatprep.subr.bf16.mxu0 0
  %1346 = vmatpush1.bf16.msra.mxu0 0
  %1347 = vmatprep.subr.bf16.mxu0 0
  %1348 = vmatpush1.bf16.msra.mxu0 0
  %1349 = vmatprep.subr.bf16.mxu0 0
  %1350 = vmatpush1.bf16.msra.mxu0 0
  %1351 = vmatprep.subr.bf16.mxu0 0
  %1352 = vmatpush1.bf16.msra.mxu0 0
  %1353 = vmatprep.subr.bf16.mxu0 0
  %1354 = vmatpush1.bf16.msra.mxu0 0
  %1355 = vmatprep.mubr.bf16.mxu0 0
  %1356 = vmatmul.mubr.bf16.gmra.mrb[0].mxu0 %v1248
  %v1357 = vpop.f32.mrb[0].mxu0
  %v1358 = vadd.f32 %v1273, %v1357
  %v1359 = vpop.f32.mrb[0].mxu0
  %v1360 = vpop.f32.mrb[0].mxu0
  %v1361 = vadd.f32 %v1273, %v1360
  %v1362 = vpop.f32.mrb[0].mxu0
  %1363 = vmatprep.mubr.bf16.mxu0 0
  %1364 = vmatmul.mubr.bf16.gmra.mrb[0].mxu0 %v1249
  %v1365 = vpop.f32.mrb[0].mxu0
  %v1366 = vadd.f32 %v1273, %v1365
  %v1367 = vpop.f32.mrb[0].mxu0
  %v1368 = vpop.f32.mrb[0].mxu0
  %v1369 = vadd.f32 %v1273, %v1368
  %v1370 = vpop.f32.mrb[0].mxu0
  %1371 = vmatprep.mubr.bf16.mxu0 0
  %1372 = vmatmul.mubr.bf16.gmra.mrb[0].mxu0 %v1250
  %v1373 = vpop.f32.mrb[0].mxu0
  %v1374 = vadd.f32 %v1273, %v1373
  %v1375 = vpop.f32.mrb[0].mxu0
  %v1376 = vpop.f32.mrb[0].mxu0
  %v1377 = vadd.f32 %v1273, %v1376
  %v1378 = vpop.f32.mrb[0].mxu0
  %1379 = vmatprep.mubr.bf16.mxu0 0
  %1380 = vmatmul.mubr.bf16.gmra.mrb[0].mxu0 %v1251
  %v1381 = vpop.f32.mrb[0].mxu0
  %v1382 = vadd.f32 %v1273, %v1381
  %v1383 = vpop.f32.mrb[0].mxu0
  %v1384 = vpop.f32.mrb[0].mxu0
  %v1385 = vadd.f32 %v1273, %v1384
  %v1386 = vpop.f32.mrb[0].mxu0
  %1387 = vdwg.mxu0
  %v1388 = vpack.c.bf16 %v1361, %v1358
  %v1389 = vpack.c.bf16 %v1369, %v1366
  %v1390 = vpack.c.bf16 %v1377, %v1374
  %v1391 = vpack.c.bf16 %v1385, %v1382
  %v1396 = vunpack.c.l.b16 %v1388
  %v1397 = vunpack.c.h.b16 %v1388
  %v1398 = vunpack.c.l.b16 %v1389
  %v1399 = vunpack.c.h.b16 %v1389
  %v1400 = vunpack.c.l.b16 %v1390
  %v1401 = vunpack.c.h.b16 %v1390
  %v1402 = vunpack.c.l.b16 %v1391
  %v1403 = vunpack.c.h.b16 %v1391
  %v1404 = vpack.c.b16 %v1396, %v1396
  %v1405 = vpack.c.b16 %v1397, %v1397
  %v1406 = vpack.c.b16 %v1398, %v1398
  %v1407 = vpack.c.b16 %v1399, %v1399
  %v1408 = vpack.c.b16 %v1400, %v1400
  %v1409 = vpack.c.b16 %v1401, %v1401
  %v1410 = vpack.c.b16 %v1402, %v1402
  %v1411 = vpack.c.b16 %v1403, %v1403
  %1420 = vst [vmem:[%s7] sm:$0xf] %v1404
  %1421 = vst [vmem:[%s7 + $0x4] sm:$0xf] %v1405
  %1422 = vst [vmem:[%s7 + $0x8] sm:$0xf] %v1406
  %1423 = vst [vmem:[%s7 + $0xc] sm:$0xf] %v1407
  %1424 = vst [vmem:[%s7 + $0x10] sm:$0xf] %v1408
  %1425 = vst [vmem:[%s7 + $0x14] sm:$0xf] %v1409
  %1426 = vst [vmem:[%s7 + $0x18] sm:$0xf] %v1410
  %1427 = vst [vmem:[%s7 + $0x1c] sm:$0xf] %v1411
  // Predicated region
  $region30: #{net_forward.1} parent=0 // pred_check
    _
  $region31: #{net_forward.1} parent=0 // pred_check_branch
    %1429 = sbr.rel (0) target = $region33
  $region32: #{net_forward.1} parent=0 // pred_region
    _
  $region33: #{net_forward.1} parent=0 // pred_fallthru
    _
  // Predicated region
  $region34: #{net_forward.1} parent=0 // pred_check
    _
  $region35: #{net_forward.1} parent=0 // pred_check_branch
    %1431 = sbr.rel (0) target = $region37
  $region36: #{net_forward.1} parent=0 // pred_region
    _
  $region37: #{net_forward.1} parent=0 // pred_fallthru
    _

</llo_original>
